<compile_context>
chip_gen: v7x
topology: tpu7x:2x2x1
jax: 0.10.0
libtpu: 0.0.40
codegen_flags: <defaults>
</compile_context>

<pallas_src>
import functools

import jax
import jax.numpy as jnp
from jax.experimental import pallas as pl
from jax.experimental.pallas import tpu as pltpu

C_IN = 3
C_OUT = 64           # final (largest) channel count

# Target pixels per grid step.  Output block = TARGET_PX * 64ch * 4B = 8 MiB;
# double-buffered output (16 MiB) + double-buffered input (<1 MiB) stays well
# inside the 32 MiB scoped-VMEM default on all generations (v7x included).
TARGET_PX = 32768
# Max images per step for the small-image (batched) regime; bounds the static
# unroll of the per-image matmul loop inside the kernel.
MAX_BATCH_TILE = 16


def _round_up(x, m):
    return -(-x // m) * m


def _fused_conv_tanh_kernel(x_ref, w_ref, b_ref, o_ref):
    """Per-tile: folded channel matmul (all four 1x1 convs), bias, tanh.

    x_ref: (B_t, C_IN, T)   w_ref: (C_OUT, C_IN)   b_ref: (C_OUT, 1)
    o_ref: (B_t, C_OUT, T)  -- lane-dense last dim for unmasked stores.
    """
    w = w_ref[...]        # hoisted out of the (small, static) batch loop
    bias = b_ref[...]
    for i in range(x_ref.shape[0]):   # static unroll, <= MAX_BATCH_TILE
        y = jnp.dot(w, x_ref[i], preferred_element_type=jnp.float32)
        o_ref[i] = jnp.tanh(y + bias)


def _fold_params(params):
    """Fold four zero-padded 1x1 convs into one (64,3) weight / (64,1) bias.

    Exact vs. summing the four separate conv outputs up to one extra f32
    rounding on the overlapping low channels (well inside test tolerance).
    """
    w_sum = jnp.zeros((C_OUT, C_IN), jnp.float32)
    b_sum = jnp.zeros((C_OUT, 1), jnp.float32)
    for wk, bk in (("wa", "ba"), ("wb", "bb"), ("wc", "bc"), ("wd", "bd")):
        w, b = params[wk], params[bk]        # w: (C_IN, c), b: (c,)
        c = w.shape[1]
        w_sum = w_sum.at[:c, :].add(w.T.astype(jnp.float32))
        b_sum = b_sum.at[:c, 0].add(b.astype(jnp.float32))
    return w_sum, b_sum


def _choose_tiling(n, hw):
    """Pick (b_t, t_hw): images and pixels per grid step.

    Large images: 1 image / step, fixed 128-multiple spatial tile, ragged tail
    handled by the cdiv grid (masked tail block) -- no whole-image fallback.
    Small images: full spatial extent per step (full-dim last block dim is
    always legal), batched over images to amortize per-step overhead.
    """
    if hw > TARGET_PX:
        return 1, TARGET_PX                       # cdiv grid masks the tail
    b_t = max(1, min(n, TARGET_PX // max(hw, 1), MAX_BATCH_TILE))
    t_hw = hw
    # v7x has 2 TensorCores per chip: ensure >= 2 program instances whenever
    # the problem allows it (harmless on single-TC v5e/v6e).
    if b_t >= n:                                  # grid would be (1, 1)
        if n >= 2:
            b_t = -(-n // 2)                      # split batch into ~2 steps
        elif hw >= 256:
            t_hw = _round_up(-(-hw // 2), 128)    # split spatial into 2 tiles
    return b_t, t_hw


@functools.partial(jax.jit, static_argnames=())
def model_tanh_forward(x_nchw, params):
    """x_nchw: (N, 3, H, W) float32.  params: dict of conv weights/biases."""
    n, c, h, w = x_nchw.shape
    assert c == C_IN
    hw = h * w
    b_t, t_hw = _choose_tiling(n, hw)

    # Free (no-transpose) reshape to (N, C_in, H*W); output stays NCHW too.
    x_flat = x_nchw.reshape(n, C_IN, hw)
    w_sum, b_sum = _fold_params(params)

    grid = (pl.cdiv(n, b_t), pl.cdiv(hw, t_hw))
    full = lambda b, j: (0, 0)   # folded weight / bias: same block every step

    cost = pl.CostEstimate(
        flops=2 * n * hw * C_OUT * C_IN,
        transcendentals=n * hw * C_OUT,
        bytes_accessed=4 * n * hw * (C_IN + C_OUT) + 4 * (C_OUT * C_IN + C_OUT),
    )

    y_flat = pl.pallas_call(
        _fused_conv_tanh_kernel,
        out_shape=jax.ShapeDtypeStruct((n, C_OUT, hw), jnp.float32),
        grid=grid,
        in_specs=[
            pl.BlockSpec((b_t, C_IN, t_hw), lambda b, j: (b, 0, j)),  # x slab
            pl.BlockSpec((C_OUT, C_IN), full),                        # W (64,3)
            pl.BlockSpec((C_OUT, 1), full),                           # bias
        ],
        out_specs=pl.BlockSpec((b_t, C_OUT, t_hw), lambda b, j: (b, 0, j)),
        compiler_params=pltpu.CompilerParams(
            dimension_semantics=("parallel", "parallel"),
            vmem_limit_bytes=40 * 1024 * 1024,
        ),
        cost_estimate=cost,
    )(x_flat, w_sum, b_sum)

    return y_flat.reshape(n, C_OUT, h, w)


def _init_conv_params(key, c_out):
    """Deterministic Conv2d(3, c_out, 1) init (PyTorch-style uniform bounds)."""
    kw, kb = jax.random.split(key)
    bound = 1.0 / jnp.sqrt(float(C_IN))   # fan_in = 3 * 1 * 1
    w = jax.random.uniform(kw, (C_IN, c_out), jnp.float32, -bound, bound)
    b = jax.random.uniform(kb, (c_out,), jnp.float32, -bound, bound)
    return w, b


def _reference(x_nchw, params):
    """Pure-JAX reference with identical (zero-pad) semantics, four separate convs."""
    x = jnp.transpose(x_nchw, (0, 2, 3, 1))            # NHWC
    acc = jnp.zeros(x.shape[:3] + (C_OUT,), jnp.float32)
    for wk, bk in (("wa", "ba"), ("wb", "bb"), ("wc", "bc"), ("wd", "bd")):
        w, b = params[wk], params[bk]
        c = w.shape[1]
        v = jnp.einsum("nhwc,cd->nhwd", x, w) + b
        acc = acc.at[..., :c].add(v)
    return jnp.transpose(jnp.tanh(acc), (0, 3, 1, 2))


if __name__ == "__main__":
    key = jax.random.PRNGKey(0)
    k_x, ka, kb, kc, kd = jax.random.split(key, 5)

    # Small shapes consistent with the module (3 input channels, NCHW).
    x = jax.random.normal(k_x, (2, 3, 16, 16), jnp.float32)

    wa, ba = _init_conv_params(ka, 8)
    wb, bb = _init_conv_params(kb, 16)
    wc, bc = _init_conv_params(kc, 32)
    wd, bd = _init_conv_params(kd, 64)
    params = dict(wa=wa, ba=ba, wb=wb, bb=bb, wc=wc, bc=bc, wd=wd, bd=bd)

    out = model_tanh_forward(x, params)
    out = jax.block_until_ready(out)

    ref = _reference(x, params)
    assert out.shape == (2, 64, 16, 16), out.shape
    assert jnp.allclose(out, ref, atol=1e-5, rtol=1e-5), "mismatch vs reference"

    print("KERNEL_OK")
</pallas_src>

<mosaic_0001>
module attributes {stable_mosaic.version = 11 : i64} {
  func.func @_fused_conv_tanh_kernel(%arg0: i32, %arg1: i32, %arg2: memref<1x3x256xf32, #tpu.memory_space<vmem>>, %arg3: memref<64x3xf32, #tpu.memory_space<vmem>>, %arg4: memref<64x1xf32, #tpu.memory_space<vmem>>, %arg5: memref<1x64x256xf32, #tpu.memory_space<vmem>>) attributes {dimension_semantics = [#tpu.dimension_semantics<parallel>, #tpu.dimension_semantics<parallel>], iteration_bounds = array<i64: 2, 1>, scalar_prefetch = 0 : i64, scratch_operands = 0 : i64, tpu.core_type = #tpu.core_type<tc>, window_params = [{transform_indices = @transform_0, window_bounds = array<i64: 1, 3, 256>}, {pipeline_mode = #tpu.pipeline_mode<synchronous>, transform_indices = @transform_1, window_bounds = array<i64: 64, 3>}, {pipeline_mode = #tpu.pipeline_mode<synchronous>, transform_indices = @transform_2, window_bounds = array<i64: 64, 1>}, {transform_indices = @transform_3, window_bounds = array<i64: 1, 64, 256>}]} {
    %c0 = arith.constant 0 : index
    %c0_0 = arith.constant 0 : index
    %0 = vector.load %arg3[%c0, %c0_0] : memref<64x3xf32, #tpu.memory_space<vmem>>, vector<64x3xf32>
    %c0_1 = arith.constant 0 : index
    %c0_2 = arith.constant 0 : index
    %1 = vector.load %arg4[%c0_1, %c0_2] : memref<64x1xf32, #tpu.memory_space<vmem>>, vector<64x1xf32>
    %c0_3 = arith.constant 0 : index
    %c0_4 = arith.constant 0 : index
    %c0_5 = arith.constant 0 : index
    %2 = vector.load %arg2[%c0_3, %c0_4, %c0_5] : memref<1x3x256xf32, #tpu.memory_space<vmem>>, vector<1x3x256xf32>
    %3 = vector.shape_cast %2 : vector<1x3x256xf32> to vector<3x256xf32>
    %cst = arith.constant dense<0.000000e+00> : vector<64x256xf32>
    %4 = tpu.matmul %0, %3, %cst {dimension_numbers = #tpu.dot_dimension_numbers<[1], [0], [0], [1], [0, 0, 1, 1], [], []>} : vector<64x3xf32>, vector<3x256xf32>, vector<64x256xf32> -> vector<64x256xf32>
    %5 = vector.broadcast %1 : vector<64x1xf32> to vector<64x256xf32>
    %6 = arith.addf %4, %5 : vector<64x256xf32>
    %7 = math.tanh %6 : vector<64x256xf32>
    %c0_6 = arith.constant 0 : index
    %c0_7 = arith.constant 0 : index
    %c0_8 = arith.constant 0 : index
    %8 = vector.load %arg5[%c0_6, %c0_7, %c0_8] : memref<1x64x256xf32, #tpu.memory_space<vmem>>, vector<1x64x256xf32>
    %9 = vector.shape_cast %8 : vector<1x64x256xf32> to vector<64x256xf32>
    %10 = vector.shape_cast %7 : vector<64x256xf32> to vector<1x64x256xf32>
    tpu.vector_store %arg5[%c0_6, %c0_7, %c0_8], %10 {strides = array<i32>} : memref<1x64x256xf32, #tpu.memory_space<vmem>>, vector<1x64x256xf32>,
    return
  }
  func.func @transform_0(%arg0: i32, %arg1: i32) -> (i32, i32, i32) {
    %c0_i32 = arith.constant 0 : i32
    %c0_i32_0 = arith.constant 0 : i32
    return %arg0, %c0_i32, %arg1 : i32, i32, i32
  }
  func.func @transform_1(%arg0: i32, %arg1: i32) -> (i32, i32) {
    %c0_i32 = arith.constant 0 : i32
    %c0_i32_0 = arith.constant 0 : i32
    %c0_i32_1 = arith.constant 0 : i32
    return %c0_i32, %c0_i32_0 : i32, i32
  }
  func.func @transform_2(%arg0: i32, %arg1: i32) -> (i32, i32) {
    %c0_i32 = arith.constant 0 : i32
    %c0_i32_0 = arith.constant 0 : i32
    %c0_i32_1 = arith.constant 0 : i32
    return %c0_i32, %c0_i32_0 : i32, i32
  }
  func.func @transform_3(%arg0: i32, %arg1: i32) -> (i32, i32, i32) {
    %c0_i32 = arith.constant 0 : i32
    %c0_i32_0 = arith.constant 0 : i32
    return %arg0, %c0_i32, %arg1 : i32, i32, i32
  }
}

</mosaic_0001>

<llo_original>
// kernel: model_tanh_forward.1
$region0: #{model_tanh_forward.1}
  #allocation0 [shape = 'u32[]', space=smem, size = 0x4, offset = 0x4, fixed_abs, tag = 'smem constant byte address 0x4 - core index']
  #allocation1 [shape = 'u32[144,128]{1,0:T(1,128)}', space=vmem, size = 0x12000, scoped, tag = 'internal scratch']
  %s0 = inlined_call_operand.vmem [shape: f32[2,3,256], index: 0, kind: input, shape index: {}]
  %s1 = inlined_call_operand.vmem [shape: f32[64,3], index: 1, kind: input, shape index: {}]
  %s2 = inlined_call_operand.vmem [shape: f32[64,1], index: 2, kind: input, shape index: {}]
  %s3 = inlined_call_operand.vmem [shape: f32[2,64,256], index: 3, kind: output, shape index: {}]
  %s4 = sld [smem:[#allocation0]]
  $region45: #{model_tanh_forward.1} parent=0
    _
  %s6 = ssub.s32 1, %s4
  %s7 = scalar_select 0, %s6, %s4
  loop: start=0, step=1, limit=4
  $region2: #{model_tanh_forward.1} parent=0 // loop_pre_header
    _
  $region3: #{model_tanh_forward.1} parent=0 // loop_header
    %s9 = sphi 0, %s13
    %p10 = scmp.ge.s32.totalorder %s9, 4
    %s16 = sphi 0, %s28
    %s17 = sphi 0, %s24
    %s18 = sphi 0, %s16
    %s19 = sphi 0, %s17
    %s20 = sphi 0, %s18
    %s21 = sphi 0, %s19
    %s33 = sphi 0, %s35
    %s36 = sphi 0, %s33
    %s37 = sphi 0, %s36
    %s53 = sphi 0, %s37
    %s57 = sphi 0, %s57
    %s59 = sphi 0, %s57
    %s60 = sphi 0, %s59
    %s74 = sphi 0, %s60
    %s78 = sphi 0, %s78
    %s80 = sphi 0, %s78
    %s81 = sphi 0, %s80
    %s95 = sphi 0, %s81
    %s103 = sphi 0, %s105
    %s106 = sphi 0, %s103
    %s107 = sphi 0, %s106
    %s123 = sphi 0, %s107
  $region4: #{model_tanh_forward.1} parent=0 // loop_header_branch
    %12 = sbr.rel (%p10) target = $region8
  $region5: #{model_tanh_forward.1} parent=0 // loop_body
    %s14 = ssub.s32 %s9, 1
    %s15 = ssub.s32 %s9, 2
    %s22 = sadd.s32 1, %s17
    %p23 = scmp.ge.s32.totalorder %s22, 1
    %s24 = scalar_select %p23, 0, %s22
    %s25 = sadd.s32 1, %s16
    %s26 = scalar_select %p23, %s25, %s16
    %p27 = scmp.ge.s32.totalorder %s26, 2
    %s28 = scalar_select %p27, 0, %s26
    %s29 = ssub.s32 %s16, %s28
    %s30 = ssub.s32 %s17, %s24
    %s31 = sor.u32 %s29, %s30
    %p32 = scmp.eq.s32.totalorder %s31, 0
    %s34 = sadd.s32 %s33, 1
    %s35 = scalar_select %p32, %s33, %s34
    %p38 = pneg %p32
    %p39 = scmp.eq.s32.totalorder %s9, 1
    %p40 = por %p38, %p39
    %p41 = scmp.ne.s32.totalorder %s33, %s36
    %p42 = scmp.eq.s32.totalorder %s9, 0
    %p43 = por %p41, %p42
    %p44 = scmp.ne.s32.totalorder %s33, %s36
    %p45 = scmp.eq.s32.totalorder %s14, 1
    %p46 = por %p44, %p45
    %p47 = scmp.ne.s32.totalorder %s36, %s37
    %p48 = scmp.eq.s32.totalorder %s14, 0
    %p49 = por %p47, %p48
    %p50 = scmp.ne.s32.totalorder %s36, %s37
    %p51 = scmp.eq.s32.totalorder %s15, 1
    %p52 = por %p50, %p51
    %p54 = scmp.ne.s32.totalorder %s37, %s53
    %p55 = scmp.eq.s32.totalorder %s15, 0
    %p56 = por %p54, %p55
    %s58 = sadd.s32 %s57, 1
    %p61 = scmp.eq.s32.totalorder %s9, 1
    %p62 = scmp.ne.s32.totalorder %s57, %s59
    %p63 = scmp.eq.s32.totalorder %s9, 0
    %p64 = por %p62, %p63
    %p65 = scmp.ne.s32.totalorder %s57, %s59
    %p66 = scmp.eq.s32.totalorder %s14, 1
    %p67 = por %p65, %p66
    %p68 = scmp.ne.s32.totalorder %s59, %s60
    %p69 = scmp.eq.s32.totalorder %s14, 0
    %p70 = por %p68, %p69
    %p71 = scmp.ne.s32.totalorder %s59, %s60
    %p72 = scmp.eq.s32.totalorder %s15, 1
    %p73 = por %p71, %p72
    %p75 = scmp.ne.s32.totalorder %s60, %s74
    %p76 = scmp.eq.s32.totalorder %s15, 0
    %p77 = por %p75, %p76
    %s79 = sadd.s32 %s78, 1
    %p82 = scmp.eq.s32.totalorder %s9, 1
    %p83 = scmp.ne.s32.totalorder %s78, %s80
    %p84 = scmp.eq.s32.totalorder %s9, 0
    %p85 = por %p83, %p84
    %p86 = scmp.ne.s32.totalorder %s78, %s80
    %p87 = scmp.eq.s32.totalorder %s14, 1
    %p88 = por %p86, %p87
    %p89 = scmp.ne.s32.totalorder %s80, %s81
    %p90 = scmp.eq.s32.totalorder %s14, 0
    %p91 = por %p89, %p90
    %p92 = scmp.ne.s32.totalorder %s80, %s81
    %p93 = scmp.eq.s32.totalorder %s15, 1
    %p94 = por %p92, %p93
    %p96 = scmp.ne.s32.totalorder %s81, %s95
    %p97 = scmp.eq.s32.totalorder %s15, 0
    %p98 = por %p96, %p97
    %s99 = ssub.s32 %s16, %s28
    %s100 = ssub.s32 %s17, %s24
    %s101 = sor.u32 %s99, %s100
    %p102 = scmp.eq.s32.totalorder %s101, 0
    %s104 = sadd.s32 %s103, 1
    %s105 = scalar_select %p102, %s103, %s104
    %p108 = pneg %p102
    %p109 = scmp.eq.s32.totalorder %s9, 1
    %p110 = por %p108, %p109
    %p111 = scmp.ne.s32.totalorder %s103, %s106
    %p112 = scmp.eq.s32.totalorder %s9, 0
    %p113 = por %p111, %p112
    %p114 = scmp.ne.s32.totalorder %s103, %s106
    %p115 = scmp.eq.s32.totalorder %s14, 1
    %p116 = por %p114, %p115
    %p117 = scmp.ne.s32.totalorder %s106, %s107
    %p118 = scmp.eq.s32.totalorder %s14, 0
    %p119 = por %p117, %p118
    %p120 = scmp.ne.s32.totalorder %s106, %s107
    %p121 = scmp.eq.s32.totalorder %s15, 1
    %p122 = por %p120, %p121
    %p124 = scmp.ne.s32.totalorder %s107, %s123
    %p125 = scmp.eq.s32.totalorder %s15, 0
    %p126 = por %p124, %p125
    %p127 = scmp.le.s32.totalorder 1, %s9
    %p128 = scmp.lt.s32.totalorder %s9, 3
    %p129 = pnand %p127, %p128
    %p130 = pneg %p129
    // Predicated region
    $region9: #{model_tanh_forward.1} parent=5 // pred_check
      _
    $region10: #{model_tanh_forward.1} parent=5 // pred_check_branch
      %132 = sbr.rel (%p129) target = $region12
    $region11: #{model_tanh_forward.1} parent=5 // pred_region
      %s133 = ssub.s32 %s9, 1
      // Predicated region
      $region13: #{model_tanh_forward.1} parent=11 // pred_check
        %p134 = pneg %p70
      $region14: #{model_tanh_forward.1} parent=11 // pred_check_branch
        %136 = sbr.rel (%p134) target = $region16
      $region15: #{model_tanh_forward.1} parent=11 // pred_region
        _
      $region16: #{model_tanh_forward.1} parent=11 // pred_fallthru
        _
      // Predicated region
      $region17: #{model_tanh_forward.1} parent=11 // pred_check
        %p137 = pneg %p91
      $region18: #{model_tanh_forward.1} parent=11 // pred_check_branch
        %139 = sbr.rel (%p137) target = $region20
      $region19: #{model_tanh_forward.1} parent=11 // pred_region
        _
      $region20: #{model_tanh_forward.1} parent=11 // pred_fallthru
        _
    $region12: #{model_tanh_forward.1} parent=5 // pred_fallthru
      _
    %p140 = scmp.lt.s32.totalorder %s9, 2
    // Predicated region
    $region21: #{model_tanh_forward.1} parent=5 // pred_check
      %p141 = pneg %p140
    $region22: #{model_tanh_forward.1} parent=5 // pred_check_branch
      %143 = sbr.rel (%p141) target = $region24
    $region23: #{model_tanh_forward.1} parent=5 // pred_region
      // Predicated region
      $region25: #{model_tanh_forward.1} parent=23 // pred_check
        %p144 = pneg %p43
      $region26: #{model_tanh_forward.1} parent=23 // pred_check_branch
        %146 = sbr.rel (%p144) target = $region28
      $region27: #{model_tanh_forward.1} parent=23 // pred_region
        %s147 = smul.u32 2, %s17
        %p148 = scmp.lt.s32.totalorder %s16, 1
        %s149 = scalar_select %p148, %s16, 1
        %p150 = scmp.lt.s32.totalorder %s147, 1
        %s151 = scalar_select %p150, %s147, 1
        %s152 = smul.addr %s149, 2
        %s153 = sadd.s32 %s151, %s152
        %s154 = smul.addr %s153, 4
        %s155 = scalar_lea.vmem %s0, %s154
        %s156 = smul.u32 2, %s17
      $region28: #{model_tanh_forward.1} parent=23 // pred_fallthru
        _
    $region24: #{model_tanh_forward.1} parent=5 // pred_fallthru
      _
    %p157 = scmp.le.s32.totalorder 1, %s9
    %p158 = scmp.lt.s32.totalorder %s9, 3
    %p159 = pnand %p157, %p158
    %p160 = pneg %p159
    // Predicated region
    $region29: #{model_tanh_forward.1} parent=5 // pred_check
      _
    $region30: #{model_tanh_forward.1} parent=5 // pred_check_branch
      %162 = sbr.rel (%p159) target = $region32
    $region31: #{model_tanh_forward.1} parent=5 // pred_region
      %s163 = ssub.s32 %s9, 1
      %s164 = smul.u32 2, %s19
      %p165 = scmp.lt.s32.totalorder %s18, 1
      %s166 = scalar_select %p165, %s18, 1
      %p167 = scmp.lt.s32.totalorder %s164, 1
      %s168 = scalar_select %p167, %s164, 1
      %s169 = smul.addr %s166, 2
      %s170 = sadd.s32 %s168, %s169
      %s171 = smul.addr %s170, 4
      %s172 = scalar_lea.vmem %s0, %s171
      %p173 = pneg %p49
      %p174 = pneg %p46
      %p175 = pneg %p70
      %p176 = pneg %p67
      %p177 = pneg %p91
      %p178 = pneg %p88
      %p179 = pneg %p119
      %p180 = pneg %p116
      %s181 = smul.u32 2, %s19
      %p182 = scmp.lt.s32.totalorder %s18, 1
      %s183 = scalar_select %p182, %s18, 1
      %p184 = scmp.lt.s32.totalorder %s181, 1
      %s185 = scalar_select %p184, %s181, 1
      %s186 = smul.addr %s183, 16
      %s187 = sadd.s32 %s185, %s186
      %s188 = smul.addr %s187, 8
      %s189 = scalar_lea.vmem %s3, %s188
      %s190 = smul.u32 2, %s19
      %p191 = scmp.lt.s32.totalorder %s18, 1
      %s192 = scalar_select %p191, %s18, 1
      %p193 = scmp.lt.s32.totalorder %s190, 1
      %s194 = scalar_select %p193, %s190, 1
      %s195 = smul.addr %s192, 2
      %s196 = sadd.s32 %s194, %s195
      %s197 = smul.addr %s196, 4
      %s198 = scalar_lea.vmem %s0, %s197
      %s199 = smul.u32 2, %s19
      %s200 = smul.u32 2, %s19
      %p201 = scmp.lt.s32.totalorder %s18, 1
      %s202 = scalar_select %p201, %s18, 1
      %p203 = scmp.lt.s32.totalorder %s200, 1
      %s204 = scalar_select %p203, %s200, 1
      %s205 = smul.addr %s202, 16
      %s206 = sadd.s32 %s204, %s205
      %s207 = smul.addr %s206, 8
      %s208 = scalar_lea.vmem %s3, %s207
      %s209 = smul.u32 2, %s19
      %v210 = vld [vmem:[%s1] sm:$0xff]
      %v211 = vld [vmem:[%s1 + $0x8] sm:$0xff]
      %v212 = vld [vmem:[%s1 + $0x10] sm:$0xff]
      %v213 = vld [vmem:[%s1 + $0x18] sm:$0xff]
      %v214 = vld [vmem:[%s1 + $0x20] sm:$0xff]
      %v215 = vld [vmem:[%s1 + $0x28] sm:$0xff]
      %v216 = vld [vmem:[%s1 + $0x30] sm:$0xff]
      %v217 = vld [vmem:[%s1 + $0x38] sm:$0xff]
      %v218 = vld [vmem:[%s2] sm:$0xff]
      %v219 = vld [vmem:[%s2 + $0x8] sm:$0xff]
      %v220 = vld [vmem:[%s2 + $0x10] sm:$0xff]
      %v221 = vld [vmem:[%s2 + $0x18] sm:$0xff]
      %v222 = vld [vmem:[%s2 + $0x20] sm:$0xff]
      %v223 = vld [vmem:[%s2 + $0x28] sm:$0xff]
      %v224 = vld [vmem:[%s2 + $0x30] sm:$0xff]
      %v225 = vld [vmem:[%s2 + $0x38] sm:$0xff]
      %v226 = vld [vmem:[%s198] sm:$0x77]
      %228 = vset.pattern.permute.xlu0 0
      %229 = vperm.xlu0 %228, %v218
      %v230 = vpop.permute.xlu0 %229
      %233 = vset.pattern.permute.xlu0 0
      %234 = vperm.xlu0 %233, %v219
      %v235 = vpop.permute.xlu0 %234
      %238 = vset.pattern.permute.xlu0 0
      %239 = vperm.xlu0 %238, %v220
      %v240 = vpop.permute.xlu0 %239
      %243 = vset.pattern.permute.xlu0 0
      %244 = vperm.xlu0 %243, %v221
      %v245 = vpop.permute.xlu0 %244
      %248 = vset.pattern.permute.xlu0 0
      %249 = vperm.xlu0 %248, %v222
      %v250 = vpop.permute.xlu0 %249
      %253 = vset.pattern.permute.xlu0 0
      %254 = vperm.xlu0 %253, %v223
      %v255 = vpop.permute.xlu0 %254
      %258 = vset.pattern.permute.xlu0 0
      %259 = vperm.xlu0 %258, %v224
      %v260 = vpop.permute.xlu0 %259
      %263 = vset.pattern.permute.xlu0 0
      %264 = vperm.xlu0 %263, %v225
      %v265 = vpop.permute.xlu0 %264
      %v268 = vcombine.high %v226, %v226
      %vm269 = vcmask 23552
      %v271 = vsel %vm269, %v210, 0
      %v274 = vsel %vm269, %v211, 0
      %v277 = vsel %vm269, %v212, 0
      %v280 = vsel %vm269, %v213, 0
      %v283 = vsel %vm269, %v214, 0
      %v286 = vsel %vm269, %v215, 0
      %v289 = vsel %vm269, %v216, 0
      %v292 = vsel %vm269, %v217, 0
      %vm294 = vcmask 1042432
      %v295 = vsel %vm294, %v226, 0
      %v297 = vsel %vm294, %v268, 0
      %299 = vmatprep.subr.mxu0 %v297
      %300 = vmatpush1.msra.mxu0 %v295
      %301 = vmatprep.subr.mxu0 0.0
      %302 = vmatpush1.msra.mxu0 0.0
      %303 = vmatprep.subr.mxu0 0.0
      %304 = vmatpush1.msra.mxu0 0.0
      %305 = vmatprep.subr.mxu0 0.0
      %306 = vmatpush1.msra.mxu0 0.0
      %307 = vmatprep.subr.mxu0 0.0
      %308 = vmatpush1.msra.mxu0 0.0
      %309 = vmatprep.subr.mxu0 0.0
      %310 = vmatpush1.msra.mxu0 0.0
      %311 = vmatprep.subr.mxu0 0.0
      %312 = vmatpush1.msra.mxu0 0.0
      %313 = vmatprep.subr.mxu0 0.0
      %314 = vmatpush1.msra.mxu0 0.0
      %315 = vmatprep.subr.mxu0 0.0
      %316 = vmatpush1.msra.mxu0 0.0
      %317 = vmatprep.subr.mxu0 0.0
      %318 = vmatpush1.msra.mxu0 0.0
      %319 = vmatprep.subr.mxu0 0.0
      %320 = vmatpush1.msra.mxu0 0.0
      %321 = vmatprep.subr.mxu0 0.0
      %322 = vmatpush1.msra.mxu0 0.0
      %323 = vmatprep.subr.mxu0 0.0
      %324 = vmatpush1.msra.mxu0 0.0
      %325 = vmatprep.subr.mxu0 0.0
      %326 = vmatpush1.msra.mxu0 0.0
      %327 = vmatprep.subr.mxu0 0.0
      %328 = vmatpush1.msra.mxu0 0.0
      %329 = vmatprep.subr.mxu0 0.0
      %330 = vmatpush1.msra.mxu0 0.0
      %331 = vmatprep.subr.mxu0 0.0
      %332 = vmatpush1.msra.mxu0 0.0
      %333 = vmatprep.subr.mxu0 0.0
      %334 = vmatpush1.msra.mxu0 0.0
      %335 = vmatprep.subr.mxu0 0.0
      %336 = vmatpush1.msra.mxu0 0.0
      %337 = vmatprep.subr.mxu0 0.0
      %338 = vmatpush1.msra.mxu0 0.0
      %339 = vmatprep.subr.mxu0 0.0
      %340 = vmatpush1.msra.mxu0 0.0
      %341 = vmatprep.subr.mxu0 0.0
      %342 = vmatpush1.msra.mxu0 0.0
      %343 = vmatprep.subr.mxu0 0.0
      %344 = vmatpush1.msra.mxu0 0.0
      %345 = vmatprep.subr.mxu0 0.0
      %346 = vmatpush1.msra.mxu0 0.0
      %347 = vmatprep.subr.mxu0 0.0
      %348 = vmatpush1.msra.mxu0 0.0
      %349 = vmatprep.subr.mxu0 0.0
      %350 = vmatpush1.msra.mxu0 0.0
      %351 = vmatprep.subr.mxu0 0.0
      %352 = vmatpush1.msra.mxu0 0.0
      %353 = vmatprep.subr.mxu0 0.0
      %354 = vmatpush1.msra.mxu0 0.0
      %355 = vmatprep.subr.mxu0 0.0
      %356 = vmatpush1.msra.mxu0 0.0
      %357 = vmatprep.subr.mxu0 0.0
      %358 = vmatpush1.msra.mxu0 0.0
      %359 = vmatprep.subr.mxu0 0.0
      %360 = vmatpush1.msra.mxu0 0.0
      %361 = vmatprep.subr.mxu0 0.0
      %362 = vmatpush1.msra.mxu0 0.0
      %363 = vmatprep.mubr.f32.mxu0 0.0
      %364 = vmatmul.mubr.f32.gmra.mrb[0].mxu0 %v271
      %v365 = vpop.f32.mrb[0].mxu0
      %v366 = vadd.f32 %v230, %v365
      %v367 = vpop.f32.mrb[0].mxu0
      %v368 = vadd.f32 %v230, %v367
      %369 = vmatprep.mubr.f32.mxu0 0.0
      %370 = vmatmul.mubr.f32.gmra.mrb[0].mxu0 %v274
      %v371 = vpop.f32.mrb[0].mxu0
      %v372 = vadd.f32 %v235, %v371
      %v373 = vpop.f32.mrb[0].mxu0
      %v374 = vadd.f32 %v235, %v373
      %375 = vmatprep.mubr.f32.mxu0 0.0
      %376 = vmatmul.mubr.f32.gmra.mrb[0].mxu0 %v277
      %v377 = vpop.f32.mrb[0].mxu0
      %v378 = vadd.f32 %v240, %v377
      %v379 = vpop.f32.mrb[0].mxu0
      %v380 = vadd.f32 %v240, %v379
      %381 = vmatprep.mubr.f32.mxu0 0.0
      %382 = vmatmul.mubr.f32.gmra.mrb[0].mxu0 %v280
      %v383 = vpop.f32.mrb[0].mxu0
      %v384 = vadd.f32 %v245, %v383
      %v385 = vpop.f32.mrb[0].mxu0
      %v386 = vadd.f32 %v245, %v385
      %387 = vmatprep.mubr.f32.mxu0 0.0
      %388 = vmatmul.mubr.f32.gmra.mrb[0].mxu0 %v283
      %v389 = vpop.f32.mrb[0].mxu0
      %v390 = vadd.f32 %v250, %v389
      %v391 = vpop.f32.mrb[0].mxu0
      %v392 = vadd.f32 %v250, %v391
      %393 = vmatprep.mubr.f32.mxu0 0.0
      %394 = vmatmul.mubr.f32.gmra.mrb[0].mxu0 %v286
      %v395 = vpop.f32.mrb[0].mxu0
      %v396 = vadd.f32 %v255, %v395
      %v397 = vpop.f32.mrb[0].mxu0
      %v398 = vadd.f32 %v255, %v397
      %399 = vmatprep.mubr.f32.mxu0 0.0
      %400 = vmatmul.mubr.f32.gmra.mrb[0].mxu0 %v289
      %v401 = vpop.f32.mrb[0].mxu0
      %v402 = vadd.f32 %v260, %v401
      %v403 = vpop.f32.mrb[0].mxu0
      %v404 = vadd.f32 %v260, %v403
      %405 = vmatprep.mubr.f32.mxu0 0.0
      %406 = vmatmul.mubr.f32.gmra.mrb[0].mxu0 %v292
      %v407 = vpop.f32.mrb[0].mxu0
      %v408 = vadd.f32 %v265, %v407
      %v409 = vpop.f32.mrb[0].mxu0
      %v410 = vadd.f32 %v265, %v409
      %411 = vdwg.mxu0
      %v412 = vtanh.pop %v366
      %v413 = vtanh.pop %v368
      %v414 = vtanh.pop %v372
      %v415 = vtanh.pop %v374
      %v416 = vtanh.pop %v378
      %v417 = vtanh.pop %v380
      %v418 = vtanh.pop %v384
      %v419 = vtanh.pop %v386
      %v420 = vtanh.pop %v390
      %v421 = vtanh.pop %v392
      %v422 = vtanh.pop %v396
      %v423 = vtanh.pop %v398
      %v424 = vtanh.pop %v402
      %v425 = vtanh.pop %v404
      %v426 = vtanh.pop %v408
      %v427 = vtanh.pop %v410
      %428 = vst [vmem:[%s208] sm:$0xff] %v412
      %429 = vst [vmem:[%s208 + $0x8] sm:$0xff] %v413
      %430 = vst [vmem:[%s208 + $0x10] sm:$0xff] %v414
      %431 = vst [vmem:[%s208 + $0x18] sm:$0xff] %v415
      %432 = vst [vmem:[%s208 + $0x20] sm:$0xff] %v416
      %433 = vst [vmem:[%s208 + $0x28] sm:$0xff] %v417
      %434 = vst [vmem:[%s208 + $0x30] sm:$0xff] %v418
      %435 = vst [vmem:[%s208 + $0x38] sm:$0xff] %v419
      %436 = vst [vmem:[%s208 + $0x40] sm:$0xff] %v420
      %437 = vst [vmem:[%s208 + $0x48] sm:$0xff] %v421
      %438 = vst [vmem:[%s208 + $0x50] sm:$0xff] %v422
      %439 = vst [vmem:[%s208 + $0x58] sm:$0xff] %v423
      %440 = vst [vmem:[%s208 + $0x60] sm:$0xff] %v424
      %441 = vst [vmem:[%s208 + $0x68] sm:$0xff] %v425
      %442 = vst [vmem:[%s208 + $0x70] sm:$0xff] %v426
      %443 = vst [vmem:[%s208 + $0x78] sm:$0xff] %v427
      %s444 = smul.u32 2, %s19
      %p445 = scmp.lt.s32.totalorder %s18, 1
      %s446 = scalar_select %p445, %s18, 1
      %p447 = scmp.lt.s32.totalorder %s444, 1
      %s448 = scalar_select %p447, %s444, 1
      %s449 = smul.addr %s446, 16
      %s450 = sadd.s32 %s448, %s449
      %s451 = smul.addr %s450, 8
      %s452 = scalar_lea.vmem %s3, %s451
      // Predicated region
      $region33: #{model_tanh_forward.1} parent=31 // pred_check
        %p453 = pneg %p116
      $region34: #{model_tanh_forward.1} parent=31 // pred_check_branch
        %455 = sbr.rel (%p453) target = $region36
      $region35: #{model_tanh_forward.1} parent=31 // pred_region
        %s456 = smul.u32 2, %s19
      $region36: #{model_tanh_forward.1} parent=31 // pred_fallthru
        _
    $region32: #{model_tanh_forward.1} parent=5 // pred_fallthru
      _
    %p457 = scmp.le.s32.totalorder 2, %s9
    // Predicated region
    $region37: #{model_tanh_forward.1} parent=5 // pred_check
      %p458 = pneg %p457
    $region38: #{model_tanh_forward.1} parent=5 // pred_check_branch
      %460 = sbr.rel (%p458) target = $region40
    $region39: #{model_tanh_forward.1} parent=5 // pred_region
      %s461 = ssub.s32 %s9, 2
      // Predicated region
      $region41: #{model_tanh_forward.1} parent=39 // pred_check
        %p462 = pneg %p122
      $region42: #{model_tanh_forward.1} parent=39 // pred_check_branch
        %464 = sbr.rel (%p462) target = $region44
      $region43: #{model_tanh_forward.1} parent=39 // pred_region
        %s465 = smul.u32 2, %s21
        %p466 = scmp.lt.s32.totalorder %s20, 1
        %s467 = scalar_select %p466, %s20, 1
        %p468 = scmp.lt.s32.totalorder %s465, 1
        %s469 = scalar_select %p468, %s465, 1
        %s470 = smul.addr %s467, 16
        %s471 = sadd.s32 %s469, %s470
        %s472 = smul.addr %s471, 8
        %s473 = scalar_lea.vmem %s3, %s472
      $region44: #{model_tanh_forward.1} parent=39 // pred_fallthru
        _
    $region40: #{model_tanh_forward.1} parent=5 // pred_fallthru
      _
  $region6: #{model_tanh_forward.1} parent=0 // loop_footer
    %s13 = sadd.s32 1, %s9
  $region7: #{model_tanh_forward.1} parent=0 // loop_footer_branch
    %8 = sbr.rel target = $region3
  $region8: #{model_tanh_forward.1} parent=0 // loop_exit
    _

</llo_original>
